<compile_context>
chip_gen: v5e
topology: v5e:2x2
jax: 0.10.0
libtpu: 0.0.40
codegen_flags: <defaults>
</compile_context>

<pallas_src>
import jax
import jax.numpy as jnp
from jax.experimental import pallas as pl
from jax.experimental.pallas import tpu as pltpu

_LANE = 128


def _round_up(v, m):
    return ((v + m - 1) // m) * m


def _vmem_budget_bytes():
    try:
        return int(pltpu.get_tpu_info().vmem_capacity_bytes)
    except Exception:
        return 64 * 1024 * 1024  # conservative: v7x physical VMEM per TensorCore


def _plan_lanes(m, c, nout, outer_steps=1, cap_hint=2048):
    """Choose a lane-tile size TM and a padded lane extent M_pad (multiple of TM)."""
    budget = _vmem_budget_bytes()
    per_lane = 2 * (c * 4 + nout * 2)               # double-buffered x(f32) + out(bf16)
    cap = max(_LANE, min(cap_hint, ((budget // 2) // per_lane) // _LANE * _LANE))
    tm = min(cap, _round_up(m, _LANE))
    m_pad = _round_up(m, tm)
    # v7x has two TensorCores: prefer >=2 'parallel' grid steps, but only when that does
    # NOT drop below full 128-lane stores (at m_pad == 128 one lane-dense step wins).
    if outer_steps * (m_pad // tm) < 2 and tm >= 2 * _LANE and tm % (2 * _LANE) == 0:
        tm //= 2
    return tm, m_pad


def _compiler_params(dim_sem, tm, c, nout):
    x_tile = c * tm * 4
    o_tile = nout * tm * 2
    w_b = _round_up(nout, 8) * c * 2
    b_b = _round_up(nout, 8) * _LANE * 4
    needed = 2 * (x_tile + o_tile) + 2 * (w_b + b_b)
    limit = int(min(64 << 20, max(16 << 20, 2 * needed)))
    return pltpu.CompilerParams(dimension_semantics=dim_sem, vmem_limit_bytes=limit)


def _matmul_bias_kernel(wt_ref, b_ref, x_ref, o_ref):
    # wt_ref: (Nout, C) bf16 (VMEM-resident across the grid)
    # b_ref : (Nout, 1) f32  (resident)
    # x_ref : (C, TM) or (1, C, TM) f32 -- cast to bf16 in-kernel (hidden under the MXU)
    # o_ref : (Nout, TM) or (1, Nout, TM) bf16 -- lane-dense along TM
    x = x_ref[0] if len(x_ref.shape) == 3 else x_ref[...]
    acc = jnp.dot(wt_ref[...], x.astype(jnp.bfloat16),
                  preferred_element_type=jnp.float32)          # MXU, f32 accumulate
    res = (acc + b_ref[...]).astype(o_ref.dtype)               # f32 bias add, bf16 store
    if len(o_ref.shape) == 3:
        o_ref[0] = res
    else:
        o_ref[...] = res


def _patch_expand_2d(x_cm, wt, b_col, tm):
    """x_cm: (C, M) f32 with batch folded into lanes; returns (Nout, M) bf16."""
    c, m = x_cm.shape
    nout = wt.shape[0]
    grid = (m // tm,)
    return pl.pallas_call(
        _matmul_bias_kernel,
        out_shape=jax.ShapeDtypeStruct((nout, m), jnp.bfloat16),
        grid_spec=pltpu.PrefetchScalarGridSpec(
            num_scalar_prefetch=0,
            grid=grid,
            in_specs=[
                pl.BlockSpec((nout, c), lambda j: (0, 0)),      # weight: resident
                pl.BlockSpec((nout, 1), lambda j: (0, 0)),      # bias: resident
                pl.BlockSpec((c, tm), lambda j: (0, j)),        # X lane tile: pipelined
            ],
            out_specs=pl.BlockSpec((nout, tm), lambda j: (0, j)),
        ),
        compiler_params=_compiler_params(("parallel",), tm, c, nout),
    )(wt, b_col, x_cm)


def _patch_expand_3d(x_ncm, wt, b_col, tm):
    """x_ncm: (N, C, M) f32; returns (N, Nout, M) bf16."""
    n, c, m = x_ncm.shape
    nout = wt.shape[0]
    grid = (n, m // tm)
    return pl.pallas_call(
        _matmul_bias_kernel,
        out_shape=jax.ShapeDtypeStruct((n, nout, m), jnp.bfloat16),
        grid_spec=pltpu.PrefetchScalarGridSpec(
            num_scalar_prefetch=0,
            grid=grid,
            in_specs=[
                pl.BlockSpec((nout, c), lambda b, j: (0, 0)),       # weight: resident
                pl.BlockSpec((nout, 1), lambda b, j: (0, 0)),       # bias: resident
                pl.BlockSpec((1, c, tm), lambda b, j: (b, 0, j)),   # X tile: pipelined
            ],
            out_specs=pl.BlockSpec((1, nout, tm), lambda b, j: (b, 0, j)),
        ),
        compiler_params=_compiler_params(("parallel", "parallel"), tm, c, nout),
    )(wt, b_col, x_ncm)


class ViTDecoderPallas:
    """JAX/Pallas equivalent of the PyTorch ViT_decoder module (forward pass)."""

    DIM = 256  # fixed in the PyTorch module

    def __init__(self, output_nc, ksize=4, key=None):
        self.output_nc = output_nc
        self.ksize = ksize
        if key is None:
            key = jax.random.PRNGKey(0)
        kw, kb = jax.random.split(key)
        # PyTorch ConvTranspose2d weight shape: (in_channels, out_channels, kH, kW)
        fan_in = self.DIM * ksize * ksize
        bound = 1.0 / (fan_in ** 0.5)
        self.weight = jax.random.uniform(
            kw, (self.DIM, output_nc, ksize, ksize),
            minval=-bound, maxval=bound, dtype=jnp.float32)
        self.bias = jax.random.uniform(
            kb, (output_nc,), minval=-bound, maxval=bound, dtype=jnp.float32)

        # Fold once (at init) into lane-dense matmul form, already in bf16:
        #   Wt[oc*k*k + ki*k + kj, c] = weight[c, oc, ki, kj]
        nout = output_nc * ksize * ksize
        self._wt = jnp.transpose(self.weight, (1, 2, 3, 0)).reshape(
            nout, self.DIM).astype(jnp.bfloat16)
        self._b_col = jnp.broadcast_to(
            self.bias.reshape(output_nc, 1, 1), (output_nc, ksize, ksize)
        ).reshape(nout, 1).astype(jnp.float32)

    def __call__(self, content_list, input_image, mask):
        content = content_list[0]                     # (N, 256, H, W), NCHW, f32
        n, c, h, w = content.shape
        assert c == self.DIM
        k, oc = self.ksize, self.output_nc
        hw = h * w
        nout = oc * k * k

        x = content.reshape(n, c, hw)                 # free reshape; stays f32 in HBM

        if hw < _LANE:
            # Fold batch into the lane axis so output stores are full 128-lane vst's.
            m = n * hw
            tm, m_pad = _plan_lanes(m, c, nout)
            x2 = jnp.transpose(x, (1, 0, 2)).reshape(c, m)   # tiny (<~ tens of KB) pre-transpose
            if m_pad > m:
                x2 = jnp.pad(x2, ((0, 0), (0, m_pad - m)))
            y = _patch_expand_2d(x2, self._wt, self._b_col, tm)      # (Nout, m_pad) bf16
            y = y[:, :m].reshape(oc, k, k, n, h, w)
            y = jnp.transpose(y, (3, 0, 4, 1, 5, 2))                 # (N, OC, H, k, W, k)
        else:
            tm, m_pad = _plan_lanes(hw, c, nout, outer_steps=n)
            if m_pad > hw:
                x = jnp.pad(x, ((0, 0), (0, 0), (0, m_pad - hw)))
            y = _patch_expand_3d(x, self._wt, self._b_col, tm)       # (N, Nout, m_pad) bf16
            y = y[:, :, :hw].reshape(n, oc, k, k, h, w)
            y = jnp.transpose(y, (0, 1, 4, 2, 5, 3))                 # (N, OC, H, k, W, k)

        # TODO(synk): fuse this reshape/transpose epilogue into the kernel's out_spec
        # (per (n, h)-row slabs with an in-kernel kj<->j lane interleave) to remove the
        # remaining extra HBM pass; kept in XLA here for Mosaic-lowering safety.
        output = y.reshape(n, oc, h * k, w * k).astype(jnp.float32)
        return output, mask


def _reference(content, weight, bias, ksize):
    # Pure-JAX f32 reference of ConvTranspose2d(stride=ksize, padding=0).
    n, c, h, w = content.shape
    oc = weight.shape[1]
    y = jnp.einsum("nchw,cokl->nohkwl", content, weight)
    y = y.reshape(n, oc, h * ksize, w * ksize)
    return y + bias.reshape(1, oc, 1, 1)


if __name__ == "__main__":
    key = jax.random.PRNGKey(0)
    k1, k2, k3, kparam = jax.random.split(key, 4)

    batch, dim, H, W = 2, 256, 8, 8     # content produced by the ViT encoder (NCHW)
    output_nc, ksize = 3, 4

    content = jax.random.normal(k1, (batch, dim, H, W), dtype=jnp.float32)
    input_image = jax.random.normal(k2, (batch, 3, H * ksize, W * ksize), dtype=jnp.float32)
    mask = jax.random.uniform(k3, (batch, 1, H * ksize, W * ksize), dtype=jnp.float32)

    dec = ViTDecoderPallas(output_nc, ksize=ksize, key=kparam)

    # Path 1: small spatial extent (HW = 64 < 128) -> batch folded into lanes.
    output, mask_out = dec([content], input_image, mask)
    output = jax.block_until_ready(output)
    mask_out = jax.block_until_ready(mask_out)
    ref = _reference(content, dec.weight, dec.bias, ksize)
    assert output.shape == (batch, output_nc, H * ksize, W * ksize)
    assert mask_out.shape == mask.shape
    # bf16 activations/intermediate => loosened tolerance vs the f32 reference.
    assert jnp.allclose(output, ref, atol=2e-2, rtol=2e-2)

    # Path 2: larger spatial extent (HW = 256 >= 128) -> per-batch lane tiles.
    H2, W2 = 16, 16
    content2 = jax.random.normal(jax.random.PRNGKey(7), (batch, dim, H2, W2), dtype=jnp.float32)
    mask2 = jnp.ones((batch, 1, H2 * ksize, W2 * ksize), dtype=jnp.float32)
    output2, _ = dec([content2], None, mask2)
    output2 = jax.block_until_ready(output2)
    ref2 = _reference(content2, dec.weight, dec.bias, ksize)
    assert output2.shape == (batch, output_nc, H2 * ksize, W2 * ksize)
    assert jnp.allclose(output2, ref2, atol=2e-2, rtol=2e-2)

    print("KERNEL_OK")
</pallas_src>

<mosaic_0001>
module attributes {stable_mosaic.version = 11 : i64} {
  func.func @_matmul_bias_kernel(%arg0: i32, %arg1: memref<48x256xbf16, #tpu.memory_space<vmem>>, %arg2: memref<48x1xf32, #tpu.memory_space<vmem>>, %arg3: memref<256x128xf32, #tpu.memory_space<vmem>>, %arg4: memref<48x128xbf16, #tpu.memory_space<vmem>>) attributes {dimension_semantics = [#tpu.dimension_semantics<parallel>], iteration_bounds = array<i64: 1>, scalar_prefetch = 0 : i64, scratch_operands = 0 : i64, tpu.core_type = #tpu.core_type<tc>, window_params = [{pipeline_mode = #tpu.pipeline_mode<synchronous>, transform_indices = @transform_0, window_bounds = array<i64: 48, 256>}, {pipeline_mode = #tpu.pipeline_mode<synchronous>, transform_indices = @transform_1, window_bounds = array<i64: 48, 1>}, {transform_indices = @transform_2, window_bounds = array<i64: 256, 128>}, {transform_indices = @transform_3, window_bounds = array<i64: 48, 128>}]} {
    %c0 = arith.constant 0 : index
    %c0_0 = arith.constant 0 : index
    %0 = vector.load %arg3[%c0, %c0_0] : memref<256x128xf32, #tpu.memory_space<vmem>>, vector<256x128xf32>
    %c0_1 = arith.constant 0 : index
    %c0_2 = arith.constant 0 : index
    %1 = vector.load %arg1[%c0_1, %c0_2] : memref<48x256xbf16, #tpu.memory_space<vmem>>, vector<48x256xbf16>
    %2 = arith.truncf %0 : vector<256x128xf32> to vector<256x128xbf16>
    %cst = arith.constant dense<0.000000e+00> : vector<48x128xf32>
    %3 = tpu.matmul %1, %2, %cst {dimension_numbers = #tpu.dot_dimension_numbers<[1], [0], [0], [1], [0, 0, 1, 1], [], []>} : vector<48x256xbf16>, vector<256x128xbf16>, vector<48x128xf32> -> vector<48x128xf32>
    %c0_3 = arith.constant 0 : index
    %c0_4 = arith.constant 0 : index
    %4 = vector.load %arg2[%c0_3, %c0_4] : memref<48x1xf32, #tpu.memory_space<vmem>>, vector<48x1xf32>
    %5 = vector.broadcast %4 : vector<48x1xf32> to vector<48x128xf32>
    %6 = arith.addf %3, %5 : vector<48x128xf32>
    %7 = arith.truncf %6 : vector<48x128xf32> to vector<48x128xbf16>
    %c0_5 = arith.constant 0 : index
    %c0_6 = arith.constant 0 : index
    %8 = vector.load %arg4[%c0_5, %c0_6] : memref<48x128xbf16, #tpu.memory_space<vmem>>, vector<48x128xbf16>
    tpu.vector_store %arg4[%c0_5, %c0_6], %7 {strides = array<i32>} : memref<48x128xbf16, #tpu.memory_space<vmem>>, vector<48x128xbf16>,
    return
  }
  func.func @transform_0(%arg0: i32) -> (i32, i32) {
    %c0_i32 = arith.constant 0 : i32
    %c0_i32_0 = arith.constant 0 : i32
    %c0_i32_1 = arith.constant 0 : i32
    return %c0_i32, %c0_i32_0 : i32, i32
  }
  func.func @transform_1(%arg0: i32) -> (i32, i32) {
    %c0_i32 = arith.constant 0 : i32
    %c0_i32_0 = arith.constant 0 : i32
    %c0_i32_1 = arith.constant 0 : i32
    return %c0_i32, %c0_i32_0 : i32, i32
  }
  func.func @transform_2(%arg0: i32) -> (i32, i32) {
    %c0_i32 = arith.constant 0 : i32
    %c0_i32_0 = arith.constant 0 : i32
    return %c0_i32, %arg0 : i32, i32
  }
  func.func @transform_3(%arg0: i32) -> (i32, i32) {
    %c0_i32 = arith.constant 0 : i32
    %c0_i32_0 = arith.constant 0 : i32
    return %c0_i32, %arg0 : i32, i32
  }
}

</mosaic_0001>

<llo_original>
// kernel: tpu_custom_call.1
$region0: #{tpu_custom_call.1}
  #allocation0 [shape = 'u32[]', space=smem, size = 0x4, offset = 0x4, fixed_abs, tag = 'smem constant byte address 0x4 - core index']
  #allocation1 [shape = 'u32[72,128]{1,0:T(1,128)}', space=vmem, size = 0x9000, scoped, tag = 'internal scratch']
  %s0 = inlined_call_operand.vmem [shape: bf16[48,256], index: 0, kind: input, shape index: {}]
  %s1 = inlined_call_operand.vmem [shape: f32[48,1], index: 1, kind: input, shape index: {}]
  %s2 = inlined_call_operand.hbm [shape: f32[256,128], index: 2, kind: input, shape index: {}]
  %s3 = inlined_call_operand.hbm [shape: bf16[48,128], index: 3, kind: output, shape index: {}]
  %s4 = sld [smem:[#allocation0]]
  $region26: #{tpu_custom_call.1} parent=0
    _
  %s6 = ssub.s32 1, %s4
  %s7 = scalar_select 0, %s6, %s4
  $region1: #{tpu_custom_call.1} parent=0
    #allocation2 [shape = 'u8[131072]{0}', space=vmem, size = 0x20000, scoped, tag = 'input window, operand 2, single buffered']
    #allocation3 [shape = 's32[1]{0}', space=sflag, size = 0x4, scoped, tag = 'scoped memory for tpu_custom_call.1']
    #allocation4 [shape = 's32[1]{0}', space=sflag, size = 0x4, scoped, tag = 'scoped memory for tpu_custom_call.1']
    #allocation5 [shape = 'u8[12288]{0}', space=vmem, size = 0x3000, scoped, tag = 'output window, operand 0, single buffered']
    %8 = vsyncpa [#allocation3], 0
    %9 = vsyncpa [#allocation4], 0
    // Predicated region
    $region2: #{tpu_custom_call.1} parent=1 // pred_check
      _
    $region3: #{tpu_custom_call.1} parent=1 // pred_check_branch
      %11 = sbr.rel (0) target = $region5
    $region4: #{tpu_custom_call.1} parent=1 // pred_region
      _
    $region5: #{tpu_custom_call.1} parent=1 // pred_fallthru
      _
    // Predicated region
    $region6: #{tpu_custom_call.1} parent=1 // pred_check
      _
    $region7: #{tpu_custom_call.1} parent=1 // pred_check_branch
      %13 = sbr.rel (0) target = $region9
    $region8: #{tpu_custom_call.1} parent=1 // pred_region
      _
    $region9: #{tpu_custom_call.1} parent=1 // pred_fallthru
      _
    // Predicated region
    $region10: #{tpu_custom_call.1} parent=1 // pred_check
      _
    $region11: #{tpu_custom_call.1} parent=1 // pred_check_branch
      %15 = sbr.rel (0) target = $region13
    $region12: #{tpu_custom_call.1} parent=1 // pred_region
      %17 = vsyncadd [#allocation3], 0
      %s18 = sshll.u32 %s2, 4
      %s19 = int_to_ptr.hbm [resolvable:$true] %s18
      %s20 = sshll.u32 [#allocation2], 4
      %s21 = int_to_ptr.vmem [resolvable:$true] %s20
      %26 = dma.hbm_to_vmem [thread:$0]  %s19, 4096, %s21, [#allocation3], 128, 128, 8
    $region13: #{tpu_custom_call.1} parent=1 // pred_fallthru
      _
    // Predicated region
    $region14: #{tpu_custom_call.1} parent=1 // pred_check
      _
    $region15: #{tpu_custom_call.1} parent=1 // pred_check_branch
      %28 = sbr.rel (0) target = $region17
    $region16: #{tpu_custom_call.1} parent=1 // pred_region
      %30 = dma.done [#allocation3], 4096
    $region17: #{tpu_custom_call.1} parent=1 // pred_fallthru
      _
    %v31 = vld [vmem:[#allocation2] sm:$0xff]
    %v32 = vld [vmem:[#allocation2 + $0x8] sm:$0xff]
    %v33 = vld [vmem:[#allocation2 + $0x10] sm:$0xff]
    %v34 = vld [vmem:[#allocation2 + $0x18] sm:$0xff]
    %v35 = vld [vmem:[#allocation2 + $0x20] sm:$0xff]
    %v36 = vld [vmem:[#allocation2 + $0x28] sm:$0xff]
    %v37 = vld [vmem:[#allocation2 + $0x30] sm:$0xff]
    %v38 = vld [vmem:[#allocation2 + $0x38] sm:$0xff]
    %v39 = vld [vmem:[#allocation2 + $0x40] sm:$0xff]
    %v40 = vld [vmem:[#allocation2 + $0x48] sm:$0xff]
    %v41 = vld [vmem:[#allocation2 + $0x50] sm:$0xff]
    %v42 = vld [vmem:[#allocation2 + $0x58] sm:$0xff]
    %v43 = vld [vmem:[#allocation2 + $0x60] sm:$0xff]
    %v44 = vld [vmem:[#allocation2 + $0x68] sm:$0xff]
    %v45 = vld [vmem:[#allocation2 + $0x70] sm:$0xff]
    %v46 = vld [vmem:[#allocation2 + $0x78] sm:$0xff]
    %v47 = vld [vmem:[#allocation2 + $0x80] sm:$0xff]
    %v48 = vld [vmem:[#allocation2 + $0x88] sm:$0xff]
    %v49 = vld [vmem:[#allocation2 + $0x90] sm:$0xff]
    %v50 = vld [vmem:[#allocation2 + $0x98] sm:$0xff]
    %v51 = vld [vmem:[#allocation2 + $0xa0] sm:$0xff]
    %v52 = vld [vmem:[#allocation2 + $0xa8] sm:$0xff]
    %v53 = vld [vmem:[#allocation2 + $0xb0] sm:$0xff]
    %v54 = vld [vmem:[#allocation2 + $0xb8] sm:$0xff]
    %v55 = vld [vmem:[#allocation2 + $0xc0] sm:$0xff]
    %v56 = vld [vmem:[#allocation2 + $0xc8] sm:$0xff]
    %v57 = vld [vmem:[#allocation2 + $0xd0] sm:$0xff]
    %v58 = vld [vmem:[#allocation2 + $0xd8] sm:$0xff]
    %v59 = vld [vmem:[#allocation2 + $0xe0] sm:$0xff]
    %v60 = vld [vmem:[#allocation2 + $0xe8] sm:$0xff]
    %v61 = vld [vmem:[#allocation2 + $0xf0] sm:$0xff]
    %v62 = vld [vmem:[#allocation2 + $0xf8] sm:$0xff]
    %v63 = vld [vmem:[%s0] sm:$0xff]
    %v64 = vld [vmem:[%s0 + $0x8] sm:$0xff]
    %v65 = vld [vmem:[%s0 + $0x10] sm:$0xff]
    %v66 = vld [vmem:[%s0 + $0x18] sm:$0xff]
    %v67 = vld [vmem:[%s0 + $0x20] sm:$0xff]
    %v68 = vld [vmem:[%s0 + $0x28] sm:$0xff]
    %v69 = vpack.c.bf16 %v32, %v31
    %v70 = vpack.c.bf16 %v34, %v33
    %v71 = vpack.c.bf16 %v36, %v35
    %v72 = vpack.c.bf16 %v38, %v37
    %v73 = vpack.c.bf16 %v40, %v39
    %v74 = vpack.c.bf16 %v42, %v41
    %v75 = vpack.c.bf16 %v44, %v43
    %v76 = vpack.c.bf16 %v46, %v45
    %v77 = vpack.c.bf16 %v48, %v47
    %v78 = vpack.c.bf16 %v50, %v49
    %v79 = vpack.c.bf16 %v52, %v51
    %v80 = vpack.c.bf16 %v54, %v53
    %v81 = vpack.c.bf16 %v56, %v55
    %v82 = vpack.c.bf16 %v58, %v57
    %v83 = vpack.c.bf16 %v60, %v59
    %v84 = vpack.c.bf16 %v62, %v61
    %v85 = vld [vmem:[%s1] sm:$0xff]
    %v86 = vld [vmem:[%s1 + $0x8] sm:$0xff]
    %v87 = vld [vmem:[%s1 + $0x10] sm:$0xff]
    %v88 = vld [vmem:[%s1 + $0x18] sm:$0xff]
    %v89 = vld [vmem:[%s1 + $0x20] sm:$0xff]
    %v90 = vld [vmem:[%s1 + $0x28] sm:$0xff]
    %92 = vset.pattern.permute.xlu0 0
    %93 = vperm.xlu0 %92, %v85
    %v94 = vpop.permute.xlu0 %93
    %97 = vset.pattern.permute.xlu0 0
    %98 = vperm.xlu0 %97, %v86
    %v99 = vpop.permute.xlu0 %98
    %102 = vset.pattern.permute.xlu0 0
    %103 = vperm.xlu0 %102, %v87
    %v104 = vpop.permute.xlu0 %103
    %107 = vset.pattern.permute.xlu0 0
    %108 = vperm.xlu0 %107, %v88
    %v109 = vpop.permute.xlu0 %108
    %112 = vset.pattern.permute.xlu0 0
    %113 = vperm.xlu0 %112, %v89
    %v114 = vpop.permute.xlu0 %113
    %117 = vset.pattern.permute.xlu0 0
    %118 = vperm.xlu0 %117, %v90
    %v119 = vpop.permute.xlu0 %118
    %v127 = vunpack.c.l.b16 %v63
    %v128 = vunpack.c.h.b16 %v63
    %v129 = vunpack.c.l.b16 %v64
    %v130 = vunpack.c.h.b16 %v64
    %v131 = vunpack.c.l.b16 %v65
    %v132 = vunpack.c.h.b16 %v65
    %v133 = vunpack.c.l.b16 %v66
    %v134 = vunpack.c.h.b16 %v66
    %v135 = vunpack.c.l.b16 %v67
    %v136 = vunpack.c.h.b16 %v67
    %v137 = vunpack.c.l.b16 %v68
    %v138 = vunpack.c.h.b16 %v68
    %v139 = vpack.c.b16 %v129, %v127
    %v140 = vpack.c.b16 %v130, %v128
    %v141 = vpack.c.b16 %v133, %v131
    %v142 = vpack.c.b16 %v134, %v132
    %v143 = vpack.c.b16 %v137, %v135
    %v144 = vpack.c.b16 %v138, %v136
    %151 = vmatpush.bf16.msra.mxu0 %v76
    %152 = vmatpush.bf16.msra.mxu0 %v75
    %153 = vmatpush.bf16.msra.mxu0 %v74
    %154 = vmatpush.bf16.msra.mxu0 %v73
    %155 = vmatpush.bf16.msra.mxu0 %v72
    %156 = vmatpush.bf16.msra.mxu0 %v71
    %157 = vmatpush.bf16.msra.mxu0 %v70
    %158 = vmatpush.bf16.msra.mxu0 %v69
    %159 = vmatmul.bf16.gmra.mxu0 %v139
    %v160 = vpop.f32.mrf.mxu0
    %v161 = vadd.f32 %v94, %v160
    %v162 = vpop.f32.mrf.mxu0
    %v163 = vadd.f32 %v99, %v162
    %164 = vmatmul.bf16.gmra.mxu0 %v141
    %v165 = vpop.f32.mrf.mxu0
    %v166 = vadd.f32 %v104, %v165
    %v167 = vpop.f32.mrf.mxu0
    %v168 = vadd.f32 %v109, %v167
    %169 = vmatmul.bf16.gmra.mxu0 %v143
    %v170 = vpop.f32.mrf.mxu0
    %v171 = vadd.f32 %v114, %v170
    %v172 = vpop.f32.mrf.mxu0
    %v173 = vadd.f32 %v119, %v172
    %174 = vdwg.mxu0
    %175 = vmatpush.bf16.msra.mxu0 %v84
    %176 = vmatpush.bf16.msra.mxu0 %v83
    %177 = vmatpush.bf16.msra.mxu0 %v82
    %178 = vmatpush.bf16.msra.mxu0 %v81
    %179 = vmatpush.bf16.msra.mxu0 %v80
    %180 = vmatpush.bf16.msra.mxu0 %v79
    %181 = vmatpush.bf16.msra.mxu0 %v78
    %182 = vmatpush.bf16.msra.mxu0 %v77
    %183 = vmatmul.bf16.gmra.mxu0 %v140
    %v184 = vpop.f32.mrf.mxu0
    %v185 = vadd.f32 %v161, %v184
    %v186 = vpop.f32.mrf.mxu0
    %v187 = vadd.f32 %v163, %v186
    %188 = vmatmul.bf16.gmra.mxu0 %v142
    %v189 = vpop.f32.mrf.mxu0
    %v190 = vadd.f32 %v166, %v189
    %v191 = vpop.f32.mrf.mxu0
    %v192 = vadd.f32 %v168, %v191
    %193 = vmatmul.bf16.gmra.mxu0 %v144
    %v194 = vpop.f32.mrf.mxu0
    %v195 = vadd.f32 %v171, %v194
    %v196 = vpop.f32.mrf.mxu0
    %v197 = vadd.f32 %v173, %v196
    %198 = vdwg.mxu0
    %v199 = vpack.c.bf16 %v185, %v185
    %v200 = vpack.c.bf16 %v187, %v187
    %v201 = vpack.c.bf16 %v190, %v190
    %v202 = vpack.c.bf16 %v192, %v192
    %v203 = vpack.c.bf16 %v195, %v195
    %v204 = vpack.c.bf16 %v197, %v197
    %205 = vst [vmem:[#allocation5] sm:$0xf] %v199
    %206 = vst [vmem:[#allocation5 + $0x4] sm:$0xf] %v200
    %207 = vst [vmem:[#allocation5 + $0x8] sm:$0xf] %v201
    %208 = vst [vmem:[#allocation5 + $0xc] sm:$0xf] %v202
    %209 = vst [vmem:[#allocation5 + $0x10] sm:$0xf] %v203
    %210 = vst [vmem:[#allocation5 + $0x14] sm:$0xf] %v204
    // Predicated region
    $region18: #{tpu_custom_call.1} parent=1 // pred_check
      _
    $region19: #{tpu_custom_call.1} parent=1 // pred_check_branch
      %212 = sbr.rel (0) target = $region21
    $region20: #{tpu_custom_call.1} parent=1 // pred_region
      %214 = vsyncadd [#allocation4], 0
      %s215 = sshll.u32 [#allocation5], 4
      %s216 = int_to_ptr.vmem [resolvable:$true] %s215
      %s217 = sshll.u32 %s3, 4
      %s218 = int_to_ptr.hbm [resolvable:$true] %s217
      %223 = dma.vmem_to_hbm [thread:$0]  %s216, 384, %s218, [#allocation4], 64, 64, 4
    $region21: #{tpu_custom_call.1} parent=1 // pred_fallthru
      _
    // Predicated region
    $region22: #{tpu_custom_call.1} parent=1 // pred_check
      _
    $region23: #{tpu_custom_call.1} parent=1 // pred_check_branch
      %225 = sbr.rel (0) target = $region25
    $region24: #{tpu_custom_call.1} parent=1 // pred_region
      %227 = dma.done [#allocation4], 384
    $region25: #{tpu_custom_call.1} parent=1 // pred_fallthru
      _
    %228 = vsyncpa [#allocation3], 1
    %229 = vsyncpa [#allocation4], 1

</llo_original>
